<compile_context>
chip_gen: v7x
topology: tpu7x:2x2x1
jax: 0.10.0
libtpu: 0.0.40
codegen_flags: <defaults>
</compile_context>

<pallas_src>
import math

import jax
import jax.numpy as jnp
from jax.experimental import pallas as pl
from jax.experimental.pallas import tpu as pltpu


# ----------------------------------------------------------------------------
# In-kernel helpers
# ----------------------------------------------------------------------------
def _im2col(row_blocks, seq, feat, k, pad, dtype):
    """Same-padded 1-D conv lowering: for each (seq, feat) block, zero-pad along
    the sequence axis and concatenate the k shifted slices along lanes, then stack
    the blocks along sublanes -> (len(row_blocks)*seq, k*feat)."""
    zp = jnp.zeros((pad, feat), dtype)
    outs = []
    for xb in row_blocks:
        xpb = jnp.concatenate([zp, xb, zp], axis=0)                 # (seq + 2*pad, feat)
        outs.append(jnp.concatenate([xpb[j:j + seq, :] for j in range(k)], axis=1))
    return outs[0] if len(outs) == 1 else jnp.concatenate(outs, axis=0)


def _ln_rows(y, gamma, beta, d_true, d_pad, eps=1e-5):
    """LayerNorm over the true (first d_true) channels of a lane-padded (M, d_pad)
    array whose padding lanes are exactly zero (weights/bias zero-padded)."""
    s = jnp.sum(y, axis=-1, keepdims=True)
    mu = s * (1.0 / d_true)
    ss = jnp.sum((y - mu) * (y - mu), axis=-1, keepdims=True)
    var = (ss - (d_pad - d_true) * mu * mu) * (1.0 / d_true)
    # padding lanes: (0 - mu) * rsqrt * gamma_pad(=0) + beta_pad(=0) == 0
    return (y - mu) * jax.lax.rsqrt(var + eps) * gamma + beta


def _make_high_kernel(tb, seq, feat, k, pad, d_true, d_pad, mm_dtype):
    def kernel(x_ref, w_ref, v_ref, o_ref):
        xs = [x_ref[b * seq:(b + 1) * seq, :].astype(mm_dtype) for b in range(tb)]
        mat = _im2col(xs, seq, feat, k, pad, mm_dtype)              # (tb*seq, k*feat)
        y = jnp.dot(mat, w_ref[...], preferred_element_type=jnp.float32)
        y = y + v_ref[0:1, :]                                       # fused conv+proj bias
        out = _ln_rows(y, v_ref[1:2, :], v_ref[2:3, :], d_true, d_pad)
        o_ref[...] = out.astype(o_ref.dtype)
    return kernel


def _make_low_kernel(tb, seq, feat, k, pad, d_true, d_pad, mm_dtype):
    def kernel(x_ref, w1_ref, w2_ref, v_ref, o_ref):
        xs = [x_ref[b * seq:(b + 1) * seq, :].astype(mm_dtype) for b in range(tb)]
        h = jnp.dot(_im2col(xs, seq, feat, k, pad, mm_dtype), w1_ref[...],
                    preferred_element_type=jnp.float32)
        h = jax.nn.gelu(h + v_ref[0:1, :feat], approximate=False)   # exact (erf) GELU, f32
        h = h.astype(mm_dtype)
        hs = [h[b * seq:(b + 1) * seq, :] for b in range(tb)]
        y = jnp.dot(_im2col(hs, seq, feat, k, pad, mm_dtype), w2_ref[...],
                    preferred_element_type=jnp.float32)
        y = y + v_ref[1:2, :d_pad]                                  # fused conv2+proj bias
        out = _ln_rows(y, v_ref[2:3, :d_pad], v_ref[3:4, :d_pad], d_true, d_pad)
        o_ref[...] = out.astype(o_ref.dtype)
    return kernel


# ----------------------------------------------------------------------------
# Wrapper: weight folding / packing, tiling, pallas_call plumbing
# ----------------------------------------------------------------------------
def _round_up(n, m):
    return ((n + m - 1) // m) * m


def _choose_tb(B, S, max_rows=1024):
    """Pick the batch tile so each grid step processes as many rows (tb*S) as a
    comfortable VMEM budget allows (measured sweet spot 512-1024 rows): fewer grid
    steps means less per-step overhead and fuller MXU rows. Falls back to the full
    batch when S is not sublane-aligned (block must then equal the whole array)."""
    if S % 8 != 0:
        return B
    divs = [d for d in range(1, B + 1) if B % d == 0]
    fit = [d for d in divs if d * S <= max_rows]
    return fit[-1] if fit else 1


def _tap_layout(w):
    # torch Conv1d weight (out, in, k) -> per-tap matrices (k, in, out)
    return jnp.transpose(w, (2, 1, 0))


def component_embedding(x, params, component_type='high',
                        matmul_dtype=jnp.float32):
    B, S, Fn = x.shape
    D = params['conv_w'].shape[0]
    Dp = _round_up(D, 128)             # lane-dense output stores
    TB = _choose_tb(B, S)

    Wc = params['conv_w'][:, :, 0].T.astype(jnp.float32)            # (F, D) 1x1 projection

    if component_type == 'high':
        K, PAD = 7, 3
        # Fold k=3,5,7 convs into one center-aligned k=7 conv (mean of 3 scales).
        taps = _tap_layout(params['ms7_w'])                          # (7, F, F)
        taps = taps.at[1:6].add(_tap_layout(params['ms5_w']))
        taps = taps.at[2:5].add(_tap_layout(params['ms3_w']))
        taps = taps / 3.0
        b_mean = (params['ms3_b'] + params['ms5_b'] + params['ms7_b']) / 3.0
        # Fold the 1x1 projection into the tap weights, then flatten for im2col.
        w_fold = jnp.einsum('kab,bd->kad', taps, Wc).reshape(K * Fn, D)
        w_pack = jnp.pad(w_fold, ((0, 0), (0, Dp - D))).astype(matmul_dtype)
        bias = jnp.pad(b_mean @ Wc + params['conv_b'], (0, Dp - D))
        v_pack = jnp.stack([bias,
                            jnp.pad(params['ln_g'], (0, Dp - D)),
                            jnp.pad(params['ln_b'], (0, Dp - D))], axis=0
                           ).astype(jnp.float32)                     # (3, Dp)
        weights = [w_pack, v_pack]
        kernel = _make_high_kernel(TB, S, Fn, K, PAD, D, Dp, matmul_dtype)
    else:
        K, PAD = 5, 2
        w1 = _tap_layout(params['sm1_w']).reshape(K * Fn, Fn).astype(matmul_dtype)
        w2 = jnp.einsum('kab,bd->kad', _tap_layout(params['sm2_w']), Wc).reshape(K * Fn, D)
        w2 = jnp.pad(w2, ((0, 0), (0, Dp - D))).astype(matmul_dtype)
        Wv = max(Fn, Dp)
        v_pack = jnp.stack([jnp.pad(params['sm1_b'], (0, Wv - Fn)),
                            jnp.pad(params['sm2_b'] @ Wc + params['conv_b'], (0, Wv - D)),
                            jnp.pad(params['ln_g'], (0, Wv - D)),
                            jnp.pad(params['ln_b'], (0, Wv - D))], axis=0
                           ).astype(jnp.float32)                     # (4, max(F, Dp))
        weights = [w1, w2, v_pack]
        kernel = _make_low_kernel(TB, S, Fn, K, PAD, D, Dp, matmul_dtype)

    # Flatten batch*seq so the kernel works on a 2-D, sublane/lane-dense slab.
    x2d = x.reshape(B * S, Fn)

    # NOTE: bump pipeline_mode=pl.Buffered(3) on the input spec if DMA is exposed.
    in_specs = [pl.BlockSpec((TB * S, Fn), lambda i: (i, 0))]
    for w in weights:                   # grid-invariant -> stay resident in VMEM
        in_specs.append(pl.BlockSpec(w.shape, lambda i: (0, 0)))
    out_spec = pl.BlockSpec((TB * S, Dp), lambda i: (i, 0))

    # Tile VMEM budget (double-buffered input/output + resident weights + slack),
    # clamped below v7x's 64 MiB physical VMEM.
    vmem_bytes = (2 * TB * S * Fn * x.dtype.itemsize
                  + 2 * TB * S * Dp * x.dtype.itemsize
                  + sum(int(w.size) * w.dtype.itemsize for w in weights)
                  + 6 * TB * S * (K * Fn + Dp) * 4)
    vmem_limit = int(min(max(2 * vmem_bytes, 16 << 20), 64 << 20))

    out2d = pl.pallas_call(
        kernel,
        out_shape=jax.ShapeDtypeStruct((B * S, Dp), x.dtype),
        grid_spec=pltpu.PrefetchScalarGridSpec(
            num_scalar_prefetch=0,
            grid=(B // TB,),
            in_specs=in_specs,
            out_specs=out_spec),
        compiler_params=pltpu.CompilerParams(
            dimension_semantics=("parallel",),
            vmem_limit_bytes=vmem_limit),
    )(x2d, *weights)

    out = out2d.reshape(B, S, Dp)
    return out if Dp == D else out[:, :, :D]


# ----------------------------------------------------------------------------
# Deterministic parameter init (shapes from ComponentEmbedding.__init__)
# ----------------------------------------------------------------------------
def init_params(key, model_dim, feature_num):
    ks = jax.random.split(key, 16)

    def conv_w(k, out_c, in_c, ksize):
        std = math.sqrt(2.0 / (in_c * ksize))
        return std * jax.random.normal(k, (out_c, in_c, ksize), jnp.float32)

    def conv_b(k, out_c, in_c, ksize):
        bound = 1.0 / math.sqrt(in_c * ksize)
        return jax.random.uniform(k, (out_c,), jnp.float32, -bound, bound)

    return {
        'conv_w': conv_w(ks[0], model_dim, feature_num, 1),
        'conv_b': conv_b(ks[1], model_dim, feature_num, 1),
        'ms3_w': conv_w(ks[2], feature_num, feature_num, 3),
        'ms3_b': conv_b(ks[3], feature_num, feature_num, 3),
        'ms5_w': conv_w(ks[4], feature_num, feature_num, 5),
        'ms5_b': conv_b(ks[5], feature_num, feature_num, 5),
        'ms7_w': conv_w(ks[6], feature_num, feature_num, 7),
        'ms7_b': conv_b(ks[7], feature_num, feature_num, 7),
        'sm1_w': conv_w(ks[8], feature_num, feature_num, 5),
        'sm1_b': conv_b(ks[9], feature_num, feature_num, 5),
        'sm2_w': conv_w(ks[10], feature_num, feature_num, 5),
        'sm2_b': conv_b(ks[11], feature_num, feature_num, 5),
        'ln_g': jnp.ones((model_dim,), jnp.float32),
        'ln_b': jnp.zeros((model_dim,), jnp.float32),
    }


# ----------------------------------------------------------------------------
# Pure-JAX reference (unfolded, validates the host-side weight algebra too)
# ----------------------------------------------------------------------------
def _ref_conv1d(x, W, b):
    k = W.shape[-1]
    pad = k // 2
    S = x.shape[1]
    xp = jnp.pad(x, ((0, 0), (pad, pad), (0, 0)))
    out = jnp.zeros((x.shape[0], S, W.shape[0]), jnp.float32) + b
    for j in range(k):
        out = out + jnp.einsum('bsf,of->bso', xp[:, j:j + S, :], W[:, :, j])
    return out


def _ref_layer_norm(x, g, b, eps=1e-5):
    mu = jnp.mean(x, -1, keepdims=True)
    var = jnp.mean((x - mu) ** 2, -1, keepdims=True)
    return (x - mu) / jnp.sqrt(var + eps) * g + b


def ref_forward(x, p, component_type='high'):
    if component_type == 'high':
        ys = [_ref_conv1d(x, p[f'ms{k}_w'], p[f'ms{k}_b']) for k in (3, 5, 7)]
        h = (ys[0] + ys[1] + ys[2]) / 3.0
    else:
        h = _ref_conv1d(x, p['sm1_w'], p['sm1_b'])
        h = jax.nn.gelu(h, approximate=False)
        h = _ref_conv1d(h, p['sm2_w'], p['sm2_b'])
    proj = _ref_conv1d(h, p['conv_w'], p['conv_b'])
    return _ref_layer_norm(proj, p['ln_g'], p['ln_b'])


# ----------------------------------------------------------------------------
if __name__ == "__main__":
    key = jax.random.PRNGKey(0)
    k_param, k_x = jax.random.split(key)

    batch, seq_len, feature_num, model_dim = 4, 16, 8, 32
    params = init_params(k_param, model_dim, feature_num)
    x = jax.random.normal(k_x, (batch, seq_len, feature_num), jnp.float32)

    for ctype in ('high', 'low'):
        ref = ref_forward(x, params, component_type=ctype)

        # f32 MXU-operand path: strict check vs unfolded reference.
        out = jax.block_until_ready(
            component_embedding(x, params, component_type=ctype))
        assert out.shape == (batch, seq_len, model_dim)
        assert jnp.allclose(out, ref, atol=1e-4, rtol=1e-4), (
            f"{ctype} f32: max err {jnp.max(jnp.abs(out - ref))}")

        # bf16 MXU-operand path (v6e/v7x optimization): looser tolerance.
        out_bf16 = jax.block_until_ready(
            component_embedding(x, params, component_type=ctype,
                                matmul_dtype=jnp.bfloat16))
        assert out_bf16.shape == (batch, seq_len, model_dim)
        assert jnp.allclose(out_bf16, ref, atol=5e-2, rtol=5e-2), (
            f"{ctype} bf16: max err {jnp.max(jnp.abs(out_bf16 - ref))}")

    print("KERNEL_OK")
</pallas_src>

<mosaic_0001>
module attributes {stable_mosaic.version = 11 : i64} {
  func.func @kernel(%arg0: i32, %arg1: memref<64x8xf32, #tpu.memory_space<vmem>>, %arg2: memref<56x128xf32, #tpu.memory_space<vmem>>, %arg3: memref<3x128xf32, #tpu.memory_space<vmem>>, %arg4: memref<64x128xf32, #tpu.memory_space<vmem>>) attributes {dimension_semantics = [#tpu.dimension_semantics<parallel>], iteration_bounds = array<i64: 1>, scalar_prefetch = 0 : i64, scratch_operands = 0 : i64, tpu.core_type = #tpu.core_type<tc>, window_params = [{transform_indices = @transform_0, window_bounds = array<i64: 64, 8>}, {pipeline_mode = #tpu.pipeline_mode<synchronous>, transform_indices = @transform_1, window_bounds = array<i64: 56, 128>}, {pipeline_mode = #tpu.pipeline_mode<synchronous>, transform_indices = @transform_2, window_bounds = array<i64: 3, 128>}, {transform_indices = @transform_3, window_bounds = array<i64: 64, 128>}]} {
    %c0 = arith.constant 0 : index
    %c0_0 = arith.constant 0 : index
    %0 = vector.load %arg1[%c0, %c0_0] : memref<64x8xf32, #tpu.memory_space<vmem>>, vector<16x8xf32>
    %c16 = arith.constant 16 : index
    %c0_1 = arith.constant 0 : index
    %1 = vector.load %arg1[%c16, %c0_1] : memref<64x8xf32, #tpu.memory_space<vmem>>, vector<16x8xf32>
    %c32 = arith.constant 32 : index
    %c0_2 = arith.constant 0 : index
    %2 = vector.load %arg1[%c32, %c0_2] : memref<64x8xf32, #tpu.memory_space<vmem>>, vector<16x8xf32>
    %c48 = arith.constant 48 : index
    %c0_3 = arith.constant 0 : index
    %3 = vector.load %arg1[%c48, %c0_3] : memref<64x8xf32, #tpu.memory_space<vmem>>, vector<16x8xf32>
    %cst = arith.constant 0.000000e+00 : f32
    %4 = vector.broadcast %cst : f32 to vector<3x8xf32>
    %5 = tpu.concatenate %4, %0, %4 in 0 : vector<3x8xf32>, vector<16x8xf32>, vector<3x8xf32> -> vector<22x8xf32>
    %6 = vector.extract_strided_slice %5 {offsets = [0, 0], sizes = [16, 8], strides = [1, 1]} : vector<22x8xf32> to vector<16x8xf32>
    %7 = vector.extract_strided_slice %5 {offsets = [1, 0], sizes = [16, 8], strides = [1, 1]} : vector<22x8xf32> to vector<16x8xf32>
    %8 = vector.extract_strided_slice %5 {offsets = [2, 0], sizes = [16, 8], strides = [1, 1]} : vector<22x8xf32> to vector<16x8xf32>
    %9 = vector.extract_strided_slice %5 {offsets = [3, 0], sizes = [16, 8], strides = [1, 1]} : vector<22x8xf32> to vector<16x8xf32>
    %10 = vector.extract_strided_slice %5 {offsets = [4, 0], sizes = [16, 8], strides = [1, 1]} : vector<22x8xf32> to vector<16x8xf32>
    %11 = vector.extract_strided_slice %5 {offsets = [5, 0], sizes = [16, 8], strides = [1, 1]} : vector<22x8xf32> to vector<16x8xf32>
    %12 = vector.extract_strided_slice %5 {offsets = [6, 0], sizes = [16, 8], strides = [1, 1]} : vector<22x8xf32> to vector<16x8xf32>
    %13 = tpu.concatenate %6, %7, %8, %9, %10, %11, %12 in 1 : vector<16x8xf32>, vector<16x8xf32>, vector<16x8xf32>, vector<16x8xf32>, vector<16x8xf32>, vector<16x8xf32>, vector<16x8xf32> -> vector<16x56xf32>
    %14 = tpu.concatenate %4, %1, %4 in 0 : vector<3x8xf32>, vector<16x8xf32>, vector<3x8xf32> -> vector<22x8xf32>
    %15 = vector.extract_strided_slice %14 {offsets = [0, 0], sizes = [16, 8], strides = [1, 1]} : vector<22x8xf32> to vector<16x8xf32>
    %16 = vector.extract_strided_slice %14 {offsets = [1, 0], sizes = [16, 8], strides = [1, 1]} : vector<22x8xf32> to vector<16x8xf32>
    %17 = vector.extract_strided_slice %14 {offsets = [2, 0], sizes = [16, 8], strides = [1, 1]} : vector<22x8xf32> to vector<16x8xf32>
    %18 = vector.extract_strided_slice %14 {offsets = [3, 0], sizes = [16, 8], strides = [1, 1]} : vector<22x8xf32> to vector<16x8xf32>
    %19 = vector.extract_strided_slice %14 {offsets = [4, 0], sizes = [16, 8], strides = [1, 1]} : vector<22x8xf32> to vector<16x8xf32>
    %20 = vector.extract_strided_slice %14 {offsets = [5, 0], sizes = [16, 8], strides = [1, 1]} : vector<22x8xf32> to vector<16x8xf32>
    %21 = vector.extract_strided_slice %14 {offsets = [6, 0], sizes = [16, 8], strides = [1, 1]} : vector<22x8xf32> to vector<16x8xf32>
    %22 = tpu.concatenate %15, %16, %17, %18, %19, %20, %21 in 1 : vector<16x8xf32>, vector<16x8xf32>, vector<16x8xf32>, vector<16x8xf32>, vector<16x8xf32>, vector<16x8xf32>, vector<16x8xf32> -> vector<16x56xf32>
    %23 = tpu.concatenate %4, %2, %4 in 0 : vector<3x8xf32>, vector<16x8xf32>, vector<3x8xf32> -> vector<22x8xf32>
    %24 = vector.extract_strided_slice %23 {offsets = [0, 0], sizes = [16, 8], strides = [1, 1]} : vector<22x8xf32> to vector<16x8xf32>
    %25 = vector.extract_strided_slice %23 {offsets = [1, 0], sizes = [16, 8], strides = [1, 1]} : vector<22x8xf32> to vector<16x8xf32>
    %26 = vector.extract_strided_slice %23 {offsets = [2, 0], sizes = [16, 8], strides = [1, 1]} : vector<22x8xf32> to vector<16x8xf32>
    %27 = vector.extract_strided_slice %23 {offsets = [3, 0], sizes = [16, 8], strides = [1, 1]} : vector<22x8xf32> to vector<16x8xf32>
    %28 = vector.extract_strided_slice %23 {offsets = [4, 0], sizes = [16, 8], strides = [1, 1]} : vector<22x8xf32> to vector<16x8xf32>
    %29 = vector.extract_strided_slice %23 {offsets = [5, 0], sizes = [16, 8], strides = [1, 1]} : vector<22x8xf32> to vector<16x8xf32>
    %30 = vector.extract_strided_slice %23 {offsets = [6, 0], sizes = [16, 8], strides = [1, 1]} : vector<22x8xf32> to vector<16x8xf32>
    %31 = tpu.concatenate %24, %25, %26, %27, %28, %29, %30 in 1 : vector<16x8xf32>, vector<16x8xf32>, vector<16x8xf32>, vector<16x8xf32>, vector<16x8xf32>, vector<16x8xf32>, vector<16x8xf32> -> vector<16x56xf32>
    %32 = tpu.concatenate %4, %3, %4 in 0 : vector<3x8xf32>, vector<16x8xf32>, vector<3x8xf32> -> vector<22x8xf32>
    %33 = vector.extract_strided_slice %32 {offsets = [0, 0], sizes = [16, 8], strides = [1, 1]} : vector<22x8xf32> to vector<16x8xf32>
    %34 = vector.extract_strided_slice %32 {offsets = [1, 0], sizes = [16, 8], strides = [1, 1]} : vector<22x8xf32> to vector<16x8xf32>
    %35 = vector.extract_strided_slice %32 {offsets = [2, 0], sizes = [16, 8], strides = [1, 1]} : vector<22x8xf32> to vector<16x8xf32>
    %36 = vector.extract_strided_slice %32 {offsets = [3, 0], sizes = [16, 8], strides = [1, 1]} : vector<22x8xf32> to vector<16x8xf32>
    %37 = vector.extract_strided_slice %32 {offsets = [4, 0], sizes = [16, 8], strides = [1, 1]} : vector<22x8xf32> to vector<16x8xf32>
    %38 = vector.extract_strided_slice %32 {offsets = [5, 0], sizes = [16, 8], strides = [1, 1]} : vector<22x8xf32> to vector<16x8xf32>
    %39 = vector.extract_strided_slice %32 {offsets = [6, 0], sizes = [16, 8], strides = [1, 1]} : vector<22x8xf32> to vector<16x8xf32>
    %40 = tpu.concatenate %33, %34, %35, %36, %37, %38, %39 in 1 : vector<16x8xf32>, vector<16x8xf32>, vector<16x8xf32>, vector<16x8xf32>, vector<16x8xf32>, vector<16x8xf32>, vector<16x8xf32> -> vector<16x56xf32>
    %41 = tpu.concatenate %13, %22, %31, %40 in 0 : vector<16x56xf32>, vector<16x56xf32>, vector<16x56xf32>, vector<16x56xf32> -> vector<64x56xf32>
    %c0_4 = arith.constant 0 : index
    %c0_5 = arith.constant 0 : index
    %42 = vector.load %arg2[%c0_4, %c0_5] : memref<56x128xf32, #tpu.memory_space<vmem>>, vector<56x128xf32>
    %cst_6 = arith.constant dense<0.000000e+00> : vector<64x128xf32>
    %43 = tpu.matmul %41, %42, %cst_6 {dimension_numbers = #tpu.dot_dimension_numbers<[1], [0], [0], [1], [0, 0, 1, 1], [], []>} : vector<64x56xf32>, vector<56x128xf32>, vector<64x128xf32> -> vector<64x128xf32>
    %c0_7 = arith.constant 0 : index
    %c0_8 = arith.constant 0 : index
    %44 = vector.load %arg3[%c0_7, %c0_8] : memref<3x128xf32, #tpu.memory_space<vmem>>, vector<1x128xf32>
    %45 = vector.broadcast %44 : vector<1x128xf32> to vector<64x128xf32>
    %46 = arith.addf %43, %45 : vector<64x128xf32>
    %c1 = arith.constant 1 : index
    %c0_9 = arith.constant 0 : index
    %47 = vector.load %arg3[%c1, %c0_9] : memref<3x128xf32, #tpu.memory_space<vmem>>, vector<1x128xf32>
    %c2 = arith.constant 2 : index
    %c0_10 = arith.constant 0 : index
    %48 = vector.load %arg3[%c2, %c0_10] : memref<3x128xf32, #tpu.memory_space<vmem>>, vector<1x128xf32>
    %cst_11 = arith.constant dense<0.000000e+00> : vector<64xf32>
    %49 = vector.multi_reduction <add>, %46, %cst_11 [1] : vector<64x128xf32> to vector<64xf32>
    %50 = vector.shape_cast %49 : vector<64xf32> to vector<64x1xf32>
    %cst_12 = arith.constant 3.125000e-02 : f32
    %51 = vector.broadcast %cst_12 : f32 to vector<64x1xf32>
    %52 = arith.mulf %50, %51 : vector<64x1xf32>
    %53 = vector.broadcast %52 : vector<64x1xf32> to vector<64x128xf32>
    %54 = arith.subf %46, %53 : vector<64x128xf32>
    %55 = vector.broadcast %52 : vector<64x1xf32> to vector<64x128xf32>
    %56 = arith.subf %46, %55 : vector<64x128xf32>
    %57 = arith.mulf %54, %56 : vector<64x128xf32>
    %cst_13 = arith.constant dense<0.000000e+00> : vector<64xf32>
    %58 = vector.multi_reduction <add>, %57, %cst_13 [1] : vector<64x128xf32> to vector<64xf32>
    %59 = vector.shape_cast %58 : vector<64xf32> to vector<64x1xf32>
    %cst_14 = arith.constant 9.600000e+01 : f32
    %60 = vector.broadcast %cst_14 : f32 to vector<64x1xf32>
    %61 = arith.mulf %60, %52 : vector<64x1xf32>
    %62 = arith.mulf %61, %52 : vector<64x1xf32>
    %63 = arith.subf %59, %62 : vector<64x1xf32>
    %cst_15 = arith.constant 3.125000e-02 : f32
    %64 = vector.broadcast %cst_15 : f32 to vector<64x1xf32>
    %65 = arith.mulf %63, %64 : vector<64x1xf32>
    %66 = vector.broadcast %52 : vector<64x1xf32> to vector<64x128xf32>
    %67 = arith.subf %46, %66 : vector<64x128xf32>
    %cst_16 = arith.constant 9.99999974E-6 : f32
    %68 = vector.broadcast %cst_16 : f32 to vector<64x1xf32>
    %69 = arith.addf %65, %68 : vector<64x1xf32>
    %70 = math.rsqrt %69 : vector<64x1xf32>
    %71 = vector.broadcast %70 : vector<64x1xf32> to vector<64x128xf32>
    %72 = arith.mulf %67, %71 : vector<64x128xf32>
    %73 = vector.broadcast %47 : vector<1x128xf32> to vector<64x128xf32>
    %74 = arith.mulf %72, %73 : vector<64x128xf32>
    %75 = vector.broadcast %48 : vector<1x128xf32> to vector<64x128xf32>
    %76 = arith.addf %74, %75 : vector<64x128xf32>
    %c0_17 = arith.constant 0 : index
    %c0_18 = arith.constant 0 : index
    %77 = vector.load %arg4[%c0_17, %c0_18] : memref<64x128xf32, #tpu.memory_space<vmem>>, vector<64x128xf32>
    tpu.vector_store %arg4[%c0_17, %c0_18], %76 {strides = array<i32>} : memref<64x128xf32, #tpu.memory_space<vmem>>, vector<64x128xf32>,
    return
  }
  func.func @transform_0(%arg0: i32) -> (i32, i32) {
    %c0_i32 = arith.constant 0 : i32
    %c0_i32_0 = arith.constant 0 : i32
    return %arg0, %c0_i32 : i32, i32
  }
  func.func @transform_1(%arg0: i32) -> (i32, i32) {
    %c0_i32 = arith.constant 0 : i32
    %c0_i32_0 = arith.constant 0 : i32
    %c0_i32_1 = arith.constant 0 : i32
    return %c0_i32, %c0_i32_0 : i32, i32
  }
  func.func @transform_2(%arg0: i32) -> (i32, i32) {
    %c0_i32 = arith.constant 0 : i32
    %c0_i32_0 = arith.constant 0 : i32
    %c0_i32_1 = arith.constant 0 : i32
    return %c0_i32, %c0_i32_0 : i32, i32
  }
  func.func @transform_3(%arg0: i32) -> (i32, i32) {
    %c0_i32 = arith.constant 0 : i32
    %c0_i32_0 = arith.constant 0 : i32
    return %arg0, %c0_i32 : i32, i32
  }
}

</mosaic_0001>

<llo_original>
// kernel: tpu_custom_call.1
$region0: #{tpu_custom_call.1}
  #allocation0 [shape = 'u32[]', space=smem, size = 0x4, offset = 0x4, fixed_abs, tag = 'smem constant byte address 0x4 - core index']
  #allocation1 [shape = 'u32[144,128]{1,0:T(1,128)}', space=vmem, size = 0x12000, scoped, tag = 'internal scratch']
  %s0 = inlined_call_operand.vmem [shape: f32[64,8], index: 0, kind: input, shape index: {}]
  %s1 = inlined_call_operand.vmem [shape: f32[56,128], index: 1, kind: input, shape index: {}]
  %s2 = inlined_call_operand.vmem [shape: f32[3,128], index: 2, kind: input, shape index: {}]
  %s3 = inlined_call_operand.hbm [shape: f32[64,128], index: 3, kind: output, shape index: {}]
  %s4 = sld [smem:[#allocation0]]
  $region22: #{tpu_custom_call.1} parent=0
    _
  %s6 = ssub.s32 1, %s4
  %s7 = scalar_select 0, %s6, %s4
  $region1: #{tpu_custom_call.1} parent=0
    #allocation2 [shape = 'u8[32768]{0}', space=vmem, size = 0x8000, scoped, tag = 'output window, operand 0, single buffered']
    #allocation3 [shape = 's32[1]{0}', space=sflag, size = 0x4, scoped, tag = 'scoped memory for tpu_custom_call.1']
    %8 = vsyncpa [#allocation3], 0
    // Predicated region
    $region2: #{tpu_custom_call.1} parent=1 // pred_check
      _
    $region3: #{tpu_custom_call.1} parent=1 // pred_check_branch
      %10 = sbr.rel (0) target = $region5
    $region4: #{tpu_custom_call.1} parent=1 // pred_region
      _
    $region5: #{tpu_custom_call.1} parent=1 // pred_fallthru
      _
    // Predicated region
    $region6: #{tpu_custom_call.1} parent=1 // pred_check
      _
    $region7: #{tpu_custom_call.1} parent=1 // pred_check_branch
      %12 = sbr.rel (0) target = $region9
    $region8: #{tpu_custom_call.1} parent=1 // pred_region
      _
    $region9: #{tpu_custom_call.1} parent=1 // pred_fallthru
      _
    // Predicated region
    $region10: #{tpu_custom_call.1} parent=1 // pred_check
      _
    $region11: #{tpu_custom_call.1} parent=1 // pred_check_branch
      %14 = sbr.rel (0) target = $region13
    $region12: #{tpu_custom_call.1} parent=1 // pred_region
      _
    $region13: #{tpu_custom_call.1} parent=1 // pred_fallthru
      _
    %v15 = vld [vmem:[%s0] sm:$0xff]
    %v16 = vld [vmem:[%s0 + $0x8] sm:$0xff]
    %v17 = vld [vmem:[%s0 + $0x10] sm:$0xff]
    %v18 = vld [vmem:[%s0 + $0x18] sm:$0xff]
    %v19 = vld [vmem:[%s0 + $0x20] sm:$0xff]
    %v20 = vld [vmem:[%s0 + $0x28] sm:$0xff]
    %v21 = vld [vmem:[%s0 + $0x30] sm:$0xff]
    %v22 = vld [vmem:[%s0 + $0x38] sm:$0xff]
    %vm25 = vcmask 1042432
    %v26 = vrot.slane %v15, 5
    %v27 = vrot.slane %v16, 5
    %v28 = vsel %vm25, %v26, %v27
    %v32 = vsel %vm25, 0.0, %v26
    %v33 = vsel %vm25, %v27, 0.0
    %vm36 = vcmask 1046528
    %v37 = vrot.slane %v32, 1
    %v38 = vrot.slane %v28, 1
    %v39 = vsel %vm36, %v37, %v38
    %v40 = vrot.slane %v33, 1
    %v41 = vsel %vm36, %v38, %v40
    %42 = vrot.lane.b32.xlu0 %v39, 8
    %v43 = vpop.permute.xlu0 %42
    %44 = vrot.lane.b32.xlu0 %v41, 8
    %v45 = vpop.permute.xlu0 %44
    %vm48 = vcmask 1045504
    %v49 = vrot.slane %v32, 2
    %v50 = vrot.slane %v28, 2
    %v51 = vsel %vm48, %v49, %v50
    %v52 = vrot.slane %v33, 2
    %v53 = vsel %vm48, %v50, %v52
    %54 = vrot.lane.b32.xlu0 %v51, 16
    %v55 = vpop.permute.xlu0 %54
    %56 = vrot.lane.b32.xlu0 %v53, 16
    %v57 = vpop.permute.xlu0 %56
    %vm60 = vcmask 1044480
    %v61 = vrot.slane %v32, 3
    %v62 = vrot.slane %v28, 3
    %v63 = vsel %vm60, %v61, %v62
    %v64 = vrot.slane %v33, 3
    %v65 = vsel %vm60, %v62, %v64
    %66 = vrot.lane.b32.xlu0 %v63, 24
    %v67 = vpop.permute.xlu0 %66
    %68 = vrot.lane.b32.xlu0 %v65, 24
    %v69 = vpop.permute.xlu0 %68
    %vm72 = vcmask 1043456
    %v73 = vrot.slane %v32, 4
    %v74 = vrot.slane %v28, 4
    %v75 = vsel %vm72, %v73, %v74
    %v76 = vrot.slane %v33, 4
    %v77 = vsel %vm72, %v74, %v76
    %78 = vrot.lane.b32.xlu0 %v75, 32
    %v79 = vpop.permute.xlu0 %78
    %80 = vrot.lane.b32.xlu0 %v77, 32
    %v81 = vpop.permute.xlu0 %80
    %v84 = vrot.slane %v32, 5
    %v85 = vrot.slane %v28, 5
    %v86 = vsel %vm25, %v84, %v85
    %v87 = vrot.slane %v33, 5
    %v88 = vsel %vm25, %v85, %v87
    %89 = vrot.lane.b32.xlu0 %v86, 40
    %v90 = vpop.permute.xlu0 %89
    %91 = vrot.lane.b32.xlu0 %v88, 40
    %v92 = vpop.permute.xlu0 %91
    %vm95 = vcmask 1041408
    %v96 = vrot.slane %v32, 6
    %v97 = vrot.slane %v28, 6
    %v98 = vsel %vm95, %v96, %v97
    %v99 = vrot.slane %v33, 6
    %v100 = vsel %vm95, %v97, %v99
    %101 = vrot.lane.b32.xlu0 %v98, 48
    %v102 = vpop.permute.xlu0 %101
    %103 = vrot.lane.b32.xlu0 %v100, 48
    %v104 = vpop.permute.xlu0 %103
    %vm107 = vcmask 64512
    %v108 = vsel %vm107, %v32, %v43
    %v109 = vsel %vm107, %v28, %v45
    %vm110 = vcmask 130048
    %v111 = vsel %vm110, %v108, %v55
    %v112 = vsel %vm110, %v109, %v57
    %vm113 = vcmask 195584
    %v114 = vsel %vm113, %v111, %v67
    %v115 = vsel %vm113, %v112, %v69
    %vm116 = vcmask 261120
    %v117 = vsel %vm116, %v114, %v79
    %v118 = vsel %vm116, %v115, %v81
    %vm119 = vcmask 326656
    %v120 = vsel %vm119, %v117, %v90
    %v121 = vsel %vm119, %v118, %v92
    %vm122 = vcmask 392192
    %v123 = vsel %vm122, %v120, %v102
    %v124 = vsel %vm122, %v121, %v104
    %v127 = vrot.slane %v17, 5
    %v128 = vrot.slane %v18, 5
    %v129 = vsel %vm25, %v127, %v128
    %v133 = vsel %vm25, 0.0, %v127
    %v134 = vsel %vm25, %v128, 0.0
    %v137 = vrot.slane %v133, 1
    %v138 = vrot.slane %v129, 1
    %v139 = vsel %vm36, %v137, %v138
    %v140 = vrot.slane %v134, 1
    %v141 = vsel %vm36, %v138, %v140
    %142 = vrot.lane.b32.xlu0 %v139, 8
    %v143 = vpop.permute.xlu0 %142
    %144 = vrot.lane.b32.xlu0 %v141, 8
    %v145 = vpop.permute.xlu0 %144
    %v148 = vrot.slane %v133, 2
    %v149 = vrot.slane %v129, 2
    %v150 = vsel %vm48, %v148, %v149
    %v151 = vrot.slane %v134, 2
    %v152 = vsel %vm48, %v149, %v151
    %153 = vrot.lane.b32.xlu0 %v150, 16
    %v154 = vpop.permute.xlu0 %153
    %155 = vrot.lane.b32.xlu0 %v152, 16
    %v156 = vpop.permute.xlu0 %155
    %v159 = vrot.slane %v133, 3
    %v160 = vrot.slane %v129, 3
    %v161 = vsel %vm60, %v159, %v160
    %v162 = vrot.slane %v134, 3
    %v163 = vsel %vm60, %v160, %v162
    %164 = vrot.lane.b32.xlu0 %v161, 24
    %v165 = vpop.permute.xlu0 %164
    %166 = vrot.lane.b32.xlu0 %v163, 24
    %v167 = vpop.permute.xlu0 %166
    %v170 = vrot.slane %v133, 4
    %v171 = vrot.slane %v129, 4
    %v172 = vsel %vm72, %v170, %v171
    %v173 = vrot.slane %v134, 4
    %v174 = vsel %vm72, %v171, %v173
    %175 = vrot.lane.b32.xlu0 %v172, 32
    %v176 = vpop.permute.xlu0 %175
    %177 = vrot.lane.b32.xlu0 %v174, 32
    %v178 = vpop.permute.xlu0 %177
    %v181 = vrot.slane %v133, 5
    %v182 = vrot.slane %v129, 5
    %v183 = vsel %vm25, %v181, %v182
    %v184 = vrot.slane %v134, 5
    %v185 = vsel %vm25, %v182, %v184
    %186 = vrot.lane.b32.xlu0 %v183, 40
    %v187 = vpop.permute.xlu0 %186
    %188 = vrot.lane.b32.xlu0 %v185, 40
    %v189 = vpop.permute.xlu0 %188
    %v192 = vrot.slane %v133, 6
    %v193 = vrot.slane %v129, 6
    %v194 = vsel %vm95, %v192, %v193
    %v195 = vrot.slane %v134, 6
    %v196 = vsel %vm95, %v193, %v195
    %197 = vrot.lane.b32.xlu0 %v194, 48
    %v198 = vpop.permute.xlu0 %197
    %199 = vrot.lane.b32.xlu0 %v196, 48
    %v200 = vpop.permute.xlu0 %199
    %v203 = vsel %vm107, %v133, %v143
    %v204 = vsel %vm107, %v129, %v145
    %v205 = vsel %vm110, %v203, %v154
    %v206 = vsel %vm110, %v204, %v156
    %v207 = vsel %vm113, %v205, %v165
    %v208 = vsel %vm113, %v206, %v167
    %v209 = vsel %vm116, %v207, %v176
    %v210 = vsel %vm116, %v208, %v178
    %v211 = vsel %vm119, %v209, %v187
    %v212 = vsel %vm119, %v210, %v189
    %v213 = vsel %vm122, %v211, %v198
    %v214 = vsel %vm122, %v212, %v200
    %v217 = vrot.slane %v19, 5
    %v218 = vrot.slane %v20, 5
    %v219 = vsel %vm25, %v217, %v218
    %v223 = vsel %vm25, 0.0, %v217
    %v224 = vsel %vm25, %v218, 0.0
    %v227 = vrot.slane %v223, 1
    %v228 = vrot.slane %v219, 1
    %v229 = vsel %vm36, %v227, %v228
    %v230 = vrot.slane %v224, 1
    %v231 = vsel %vm36, %v228, %v230
    %232 = vrot.lane.b32.xlu0 %v229, 8
    %v233 = vpop.permute.xlu0 %232
    %234 = vrot.lane.b32.xlu0 %v231, 8
    %v235 = vpop.permute.xlu0 %234
    %v238 = vrot.slane %v223, 2
    %v239 = vrot.slane %v219, 2
    %v240 = vsel %vm48, %v238, %v239
    %v241 = vrot.slane %v224, 2
    %v242 = vsel %vm48, %v239, %v241
    %243 = vrot.lane.b32.xlu0 %v240, 16
    %v244 = vpop.permute.xlu0 %243
    %245 = vrot.lane.b32.xlu0 %v242, 16
    %v246 = vpop.permute.xlu0 %245
    %v249 = vrot.slane %v223, 3
    %v250 = vrot.slane %v219, 3
    %v251 = vsel %vm60, %v249, %v250
    %v252 = vrot.slane %v224, 3
    %v253 = vsel %vm60, %v250, %v252
    %254 = vrot.lane.b32.xlu0 %v251, 24
    %v255 = vpop.permute.xlu0 %254
    %256 = vrot.lane.b32.xlu0 %v253, 24
    %v257 = vpop.permute.xlu0 %256
    %v260 = vrot.slane %v223, 4
    %v261 = vrot.slane %v219, 4
    %v262 = vsel %vm72, %v260, %v261
    %v263 = vrot.slane %v224, 4
    %v264 = vsel %vm72, %v261, %v263
    %265 = vrot.lane.b32.xlu0 %v262, 32
    %v266 = vpop.permute.xlu0 %265
    %267 = vrot.lane.b32.xlu0 %v264, 32
    %v268 = vpop.permute.xlu0 %267
    %v271 = vrot.slane %v223, 5
    %v272 = vrot.slane %v219, 5
    %v273 = vsel %vm25, %v271, %v272
    %v274 = vrot.slane %v224, 5
    %v275 = vsel %vm25, %v272, %v274
    %276 = vrot.lane.b32.xlu0 %v273, 40
    %v277 = vpop.permute.xlu0 %276
    %278 = vrot.lane.b32.xlu0 %v275, 40
    %v279 = vpop.permute.xlu0 %278
    %v282 = vrot.slane %v223, 6
    %v283 = vrot.slane %v219, 6
    %v284 = vsel %vm95, %v282, %v283
    %v285 = vrot.slane %v224, 6
    %v286 = vsel %vm95, %v283, %v285
    %287 = vrot.lane.b32.xlu0 %v284, 48
    %v288 = vpop.permute.xlu0 %287
    %289 = vrot.lane.b32.xlu0 %v286, 48
    %v290 = vpop.permute.xlu0 %289
    %v293 = vsel %vm107, %v223, %v233
    %v294 = vsel %vm107, %v219, %v235
    %v295 = vsel %vm110, %v293, %v244
    %v296 = vsel %vm110, %v294, %v246
    %v297 = vsel %vm113, %v295, %v255
    %v298 = vsel %vm113, %v296, %v257
    %v299 = vsel %vm116, %v297, %v266
    %v300 = vsel %vm116, %v298, %v268
    %v301 = vsel %vm119, %v299, %v277
    %v302 = vsel %vm119, %v300, %v279
    %v303 = vsel %vm122, %v301, %v288
    %v304 = vsel %vm122, %v302, %v290
    %v307 = vrot.slane %v21, 5
    %v308 = vrot.slane %v22, 5
    %v309 = vsel %vm25, %v307, %v308
    %v313 = vsel %vm25, 0.0, %v307
    %v314 = vsel %vm25, %v308, 0.0
    %v317 = vrot.slane %v313, 1
    %v318 = vrot.slane %v309, 1
    %v319 = vsel %vm36, %v317, %v318
    %v320 = vrot.slane %v314, 1
    %v321 = vsel %vm36, %v318, %v320
    %322 = vrot.lane.b32.xlu0 %v319, 8
    %v323 = vpop.permute.xlu0 %322
    %324 = vrot.lane.b32.xlu0 %v321, 8
    %v325 = vpop.permute.xlu0 %324
    %v328 = vrot.slane %v313, 2
    %v329 = vrot.slane %v309, 2
    %v330 = vsel %vm48, %v328, %v329
    %v331 = vrot.slane %v314, 2
    %v332 = vsel %vm48, %v329, %v331
    %333 = vrot.lane.b32.xlu0 %v330, 16
    %v334 = vpop.permute.xlu0 %333
    %335 = vrot.lane.b32.xlu0 %v332, 16
    %v336 = vpop.permute.xlu0 %335
    %v339 = vrot.slane %v313, 3
    %v340 = vrot.slane %v309, 3
    %v341 = vsel %vm60, %v339, %v340
    %v342 = vrot.slane %v314, 3
    %v343 = vsel %vm60, %v340, %v342
    %344 = vrot.lane.b32.xlu0 %v341, 24
    %v345 = vpop.permute.xlu0 %344
    %346 = vrot.lane.b32.xlu0 %v343, 24
    %v347 = vpop.permute.xlu0 %346
    %v350 = vrot.slane %v313, 4
    %v351 = vrot.slane %v309, 4
    %v352 = vsel %vm72, %v350, %v351
    %v353 = vrot.slane %v314, 4
    %v354 = vsel %vm72, %v351, %v353
    %355 = vrot.lane.b32.xlu0 %v352, 32
    %v356 = vpop.permute.xlu0 %355
    %357 = vrot.lane.b32.xlu0 %v354, 32
    %v358 = vpop.permute.xlu0 %357
    %v361 = vrot.slane %v313, 5
    %v362 = vrot.slane %v309, 5
    %v363 = vsel %vm25, %v361, %v362
    %v364 = vrot.slane %v314, 5
    %v365 = vsel %vm25, %v362, %v364
    %366 = vrot.lane.b32.xlu0 %v363, 40
    %v367 = vpop.permute.xlu0 %366
    %368 = vrot.lane.b32.xlu0 %v365, 40
    %v369 = vpop.permute.xlu0 %368
    %v372 = vrot.slane %v313, 6
    %v373 = vrot.slane %v309, 6
    %v374 = vsel %vm95, %v372, %v373
    %v375 = vrot.slane %v314, 6
    %v376 = vsel %vm95, %v373, %v375
    %377 = vrot.lane.b32.xlu0 %v374, 48
    %v378 = vpop.permute.xlu0 %377
    %379 = vrot.lane.b32.xlu0 %v376, 48
    %v380 = vpop.permute.xlu0 %379
    %v383 = vsel %vm107, %v313, %v323
    %v384 = vsel %vm107, %v309, %v325
    %v385 = vsel %vm110, %v383, %v334
    %v386 = vsel %vm110, %v384, %v336
    %v387 = vsel %vm113, %v385, %v345
    %v388 = vsel %vm113, %v386, %v347
    %v389 = vsel %vm116, %v387, %v356
    %v390 = vsel %vm116, %v388, %v358
    %v391 = vsel %vm119, %v389, %v367
    %v392 = vsel %vm119, %v390, %v369
    %v393 = vsel %vm122, %v391, %v378
    %v394 = vsel %vm122, %v392, %v380
    %v395 = vld [vmem:[%s1] sm:$0xff]
    %v396 = vld [vmem:[%s1 + $0x8] sm:$0xff]
    %v397 = vld [vmem:[%s1 + $0x10] sm:$0xff]
    %v398 = vld [vmem:[%s1 + $0x18] sm:$0xff]
    %v399 = vld [vmem:[%s1 + $0x20] sm:$0xff]
    %v400 = vld [vmem:[%s1 + $0x28] sm:$0xff]
    %v401 = vld [vmem:[%s1 + $0x30] sm:$0xff]
    %v402 = vld [vmem:[%s2] sm:$0x1]
    %v403 = vlaneseq
    %v404 = vshrl.u32 %v403, 7
    %v405 = vsub.s32 0, %v404
    %v406 = vrot.slane %v402, %v405
    %vm407 = vcmask 457728
    %v409 = vsel %vm407, %v123, 0
    %v412 = vsel %vm407, %v124, 0
    %v415 = vsel %vm407, %v213, 0
    %v418 = vsel %vm407, %v214, 0
    %v421 = vsel %vm407, %v303, 0
    %v424 = vsel %vm407, %v304, 0
    %v427 = vsel %vm407, %v393, 0
    %v430 = vsel %vm407, %v394, 0
    %432 = vmatprep.subr.mxu0 0.0
    %433 = vmatpush1.msra.mxu0 %v395
    %434 = vmatprep.subr.mxu0 0.0
    %435 = vmatpush1.msra.mxu0 %v396
    %436 = vmatprep.subr.mxu0 0.0
    %437 = vmatpush1.msra.mxu0 %v397
    %438 = vmatprep.subr.mxu0 0.0
    %439 = vmatpush1.msra.mxu0 %v398
    %440 = vmatprep.subr.mxu0 0.0
    %441 = vmatpush1.msra.mxu0 %v399
    %442 = vmatprep.subr.mxu0 0.0
    %443 = vmatpush1.msra.mxu0 %v400
    %444 = vmatprep.subr.mxu0 0.0
    %445 = vmatpush1.msra.mxu0 %v401
    %446 = vmatprep.subr.mxu0 0.0
    %447 = vmatpush1.msra.mxu0 0.0
    %448 = vmatprep.subr.mxu0 0.0
    %449 = vmatpush1.msra.mxu0 0.0
    %450 = vmatprep.subr.mxu0 0.0
    %451 = vmatpush1.msra.mxu0 0.0
    %452 = vmatprep.subr.mxu0 0.0
    %453 = vmatpush1.msra.mxu0 0.0
    %454 = vmatprep.subr.mxu0 0.0
    %455 = vmatpush1.msra.mxu0 0.0
    %456 = vmatprep.subr.mxu0 0.0
    %457 = vmatpush1.msra.mxu0 0.0
    %458 = vmatprep.subr.mxu0 0.0
    %459 = vmatpush1.msra.mxu0 0.0
    %460 = vmatprep.subr.mxu0 0.0
    %461 = vmatpush1.msra.mxu0 0.0
    %462 = vmatprep.subr.mxu0 0.0
    %463 = vmatpush1.msra.mxu0 0.0
    %464 = vmatprep.subr.mxu0 0.0
    %465 = vmatpush1.msra.mxu0 0.0
    %466 = vmatprep.subr.mxu0 0.0
    %467 = vmatpush1.msra.mxu0 0.0
    %468 = vmatprep.subr.mxu0 0.0
    %469 = vmatpush1.msra.mxu0 0.0
    %470 = vmatprep.subr.mxu0 0.0
    %471 = vmatpush1.msra.mxu0 0.0
    %472 = vmatprep.subr.mxu0 0.0
    %473 = vmatpush1.msra.mxu0 0.0
    %474 = vmatprep.subr.mxu0 0.0
    %475 = vmatpush1.msra.mxu0 0.0
    %476 = vmatprep.subr.mxu0 0.0
    %477 = vmatpush1.msra.mxu0 0.0
    %478 = vmatprep.subr.mxu0 0.0
    %479 = vmatpush1.msra.mxu0 0.0
    %480 = vmatprep.subr.mxu0 0.0
    %481 = vmatpush1.msra.mxu0 0.0
    %482 = vmatprep.subr.mxu0 0.0
    %483 = vmatpush1.msra.mxu0 0.0
    %484 = vmatprep.subr.mxu0 0.0
    %485 = vmatpush1.msra.mxu0 0.0
    %486 = vmatprep.subr.mxu0 0.0
    %487 = vmatpush1.msra.mxu0 0.0
    %488 = vmatprep.subr.mxu0 0.0
    %489 = vmatpush1.msra.mxu0 0.0
    %490 = vmatprep.subr.mxu0 0.0
    %491 = vmatpush1.msra.mxu0 0.0
    %492 = vmatprep.subr.mxu0 0.0
    %493 = vmatpush1.msra.mxu0 0.0
    %494 = vmatprep.subr.mxu0 0.0
    %495 = vmatpush1.msra.mxu0 0.0
    %496 = vmatprep.mubr.f32.mxu0 0.0
    %497 = vmatmul.mubr.f32.gmra.mrb[0].mxu0 %v409
    %v498 = vpop.f32.mrb[0].mxu0
    %v499 = vadd.f32 %v406, %v498
    %v500 = vpop.f32.mrb[0].mxu0
    %501 = vmatprep.mubr.f32.mxu0 0.0
    %502 = vmatmul.mubr.f32.gmra.mrb[0].mxu0 %v412
    %v503 = vpop.f32.mrb[0].mxu0
    %v504 = vadd.f32 %v406, %v503
    %v505 = vpop.f32.mrb[0].mxu0
    %506 = vmatprep.mubr.f32.mxu0 0.0
    %507 = vmatmul.mubr.f32.gmra.mrb[0].mxu0 %v415
    %v508 = vpop.f32.mrb[0].mxu0
    %v509 = vadd.f32 %v406, %v508
    %v510 = vpop.f32.mrb[0].mxu0
    %511 = vmatprep.mubr.f32.mxu0 0.0
    %512 = vmatmul.mubr.f32.gmra.mrb[0].mxu0 %v418
    %v513 = vpop.f32.mrb[0].mxu0
    %v514 = vadd.f32 %v406, %v513
    %v515 = vpop.f32.mrb[0].mxu0
    %516 = vmatprep.mubr.f32.mxu0 0.0
    %517 = vmatmul.mubr.f32.gmra.mrb[0].mxu0 %v421
    %v518 = vpop.f32.mrb[0].mxu0
    %v519 = vadd.f32 %v406, %v518
    %v520 = vpop.f32.mrb[0].mxu0
    %521 = vmatprep.mubr.f32.mxu0 0.0
    %522 = vmatmul.mubr.f32.gmra.mrb[0].mxu0 %v424
    %v523 = vpop.f32.mrb[0].mxu0
    %v524 = vadd.f32 %v406, %v523
    %v525 = vpop.f32.mrb[0].mxu0
    %526 = vmatprep.mubr.f32.mxu0 0.0
    %527 = vmatmul.mubr.f32.gmra.mrb[0].mxu0 %v427
    %v528 = vpop.f32.mrb[0].mxu0
    %v529 = vadd.f32 %v406, %v528
    %v530 = vpop.f32.mrb[0].mxu0
    %531 = vmatprep.mubr.f32.mxu0 0.0
    %532 = vmatmul.mubr.f32.gmra.mrb[0].mxu0 %v430
    %v533 = vpop.f32.mrb[0].mxu0
    %v534 = vadd.f32 %v406, %v533
    %v535 = vpop.f32.mrb[0].mxu0
    %536 = vdwg.mxu0
    %v537 = vld [vmem:[%s2 + $0x1] sm:$0x1]
    %v538 = vld [vmem:[%s2 + $0x2] sm:$0x1]
    %539 = vadd.xlane.f32.xlu0 %v499
    %v540 = vpop.xlane.xlu0 %539
    %541 = vadd.xlane.f32.xlu0 %v504
    %v542 = vpop.xlane.xlu0 %541
    %543 = vadd.xlane.f32.xlu0 %v509
    %v544 = vpop.xlane.xlu0 %543
    %545 = vadd.xlane.f32.xlu0 %v514
    %v546 = vpop.xlane.xlu0 %545
    %547 = vadd.xlane.f32.xlu0 %v519
    %v548 = vpop.xlane.xlu0 %547
    %549 = vadd.xlane.f32.xlu0 %v524
    %v550 = vpop.xlane.xlu0 %549
    %551 = vadd.xlane.f32.xlu0 %v529
    %v552 = vpop.xlane.xlu0 %551
    %553 = vadd.xlane.f32.xlu0 %v534
    %v554 = vpop.xlane.xlu0 %553
    %v555 = vmul.f32 %v540, 0.03125
    %v556 = vmul.f32 %v542, 0.03125
    %v557 = vmul.f32 %v544, 0.03125
    %v558 = vmul.f32 %v546, 0.03125
    %v559 = vmul.f32 %v548, 0.03125
    %v560 = vmul.f32 %v550, 0.03125
    %v561 = vmul.f32 %v552, 0.03125
    %v562 = vmul.f32 %v554, 0.03125
    %v563 = vsub.f32 %v499, %v555
    %v564 = vsub.f32 %v504, %v556
    %v565 = vsub.f32 %v509, %v557
    %v566 = vsub.f32 %v514, %v558
    %v567 = vsub.f32 %v519, %v559
    %v568 = vsub.f32 %v524, %v560
    %v569 = vsub.f32 %v529, %v561
    %v570 = vsub.f32 %v534, %v562
    %v571 = vmul.f32 %v563, %v563
    %v572 = vmul.f32 %v564, %v564
    %v573 = vmul.f32 %v565, %v565
    %v574 = vmul.f32 %v566, %v566
    %v575 = vmul.f32 %v567, %v567
    %v576 = vmul.f32 %v568, %v568
    %v577 = vmul.f32 %v569, %v569
    %v578 = vmul.f32 %v570, %v570
    %579 = vadd.xlane.f32.xlu0 %v571
    %v580 = vpop.xlane.xlu0 %579
    %581 = vadd.xlane.f32.xlu0 %v572
    %v582 = vpop.xlane.xlu0 %581
    %583 = vadd.xlane.f32.xlu0 %v573
    %v584 = vpop.xlane.xlu0 %583
    %585 = vadd.xlane.f32.xlu0 %v574
    %v586 = vpop.xlane.xlu0 %585
    %587 = vadd.xlane.f32.xlu0 %v575
    %v588 = vpop.xlane.xlu0 %587
    %589 = vadd.xlane.f32.xlu0 %v576
    %v590 = vpop.xlane.xlu0 %589
    %591 = vadd.xlane.f32.xlu0 %v577
    %v592 = vpop.xlane.xlu0 %591
    %593 = vadd.xlane.f32.xlu0 %v578
    %v594 = vpop.xlane.xlu0 %593
    %v595 = vmul.f32 %v555, 96.0
    %v596 = vmul.f32 %v556, 96.0
    %v597 = vmul.f32 %v557, 96.0
    %v598 = vmul.f32 %v558, 96.0
    %v599 = vmul.f32 %v559, 96.0
    %v600 = vmul.f32 %v560, 96.0
    %v601 = vmul.f32 %v561, 96.0
    %v602 = vmul.f32 %v562, 96.0
    %v603 = vmul.f32 %v595, %v555
    %v604 = vmul.f32 %v596, %v556
    %v605 = vmul.f32 %v597, %v557
    %v606 = vmul.f32 %v598, %v558
    %v607 = vmul.f32 %v599, %v559
    %v608 = vmul.f32 %v600, %v560
    %v609 = vmul.f32 %v601, %v561
    %v610 = vmul.f32 %v602, %v562
    %v611 = vsub.f32 %v580, %v603
    %v612 = vsub.f32 %v582, %v604
    %v613 = vsub.f32 %v584, %v605
    %v614 = vsub.f32 %v586, %v606
    %v615 = vsub.f32 %v588, %v607
    %v616 = vsub.f32 %v590, %v608
    %v617 = vsub.f32 %v592, %v609
    %v618 = vsub.f32 %v594, %v610
    %v619 = vmul.f32 %v611, 0.03125
    %v620 = vmul.f32 %v612, 0.03125
    %v621 = vmul.f32 %v613, 0.03125
    %v622 = vmul.f32 %v614, 0.03125
    %v623 = vmul.f32 %v615, 0.03125
    %v624 = vmul.f32 %v616, 0.03125
    %v625 = vmul.f32 %v617, 0.03125
    %v626 = vmul.f32 %v618, 0.03125
    %v627 = vadd.f32 %v619, 1e-05
    %v628 = vadd.f32 %v620, 1e-05
    %v629 = vadd.f32 %v621, 1e-05
    %v630 = vadd.f32 %v622, 1e-05
    %v631 = vadd.f32 %v623, 1e-05
    %v632 = vadd.f32 %v624, 1e-05
    %v633 = vadd.f32 %v625, 1e-05
    %v634 = vadd.f32 %v626, 1e-05
    %v635 = vrsqrt.pop %v627
    %v636 = vrsqrt.pop %v628
    %v637 = vrsqrt.pop %v629
    %v638 = vrsqrt.pop %v630
    %v639 = vrsqrt.pop %v631
    %v640 = vrsqrt.pop %v632
    %v641 = vrsqrt.pop %v633
    %v642 = vrsqrt.pop %v634
    %v643 = vmul.f32 %v563, %v635
    %v644 = vmul.f32 %v564, %v636
    %v645 = vmul.f32 %v565, %v637
    %v646 = vmul.f32 %v566, %v638
    %v647 = vmul.f32 %v567, %v639
    %v648 = vmul.f32 %v568, %v640
    %v649 = vmul.f32 %v569, %v641
    %v650 = vmul.f32 %v570, %v642
    %v651 = vlaneseq
    %v652 = vshrl.u32 %v651, 7
    %v653 = vsub.s32 0, %v652
    %v654 = vrot.slane %v537, %v653
    %v655 = vmul.f32 %v643, %v654
    %v656 = vmul.f32 %v644, %v654
    %v657 = vmul.f32 %v645, %v654
    %v658 = vmul.f32 %v646, %v654
    %v659 = vmul.f32 %v647, %v654
    %v660 = vmul.f32 %v648, %v654
    %v661 = vmul.f32 %v649, %v654
    %v662 = vmul.f32 %v650, %v654
    %v663 = vlaneseq
    %v664 = vshrl.u32 %v663, 7
    %v665 = vsub.s32 0, %v664
    %v666 = vrot.slane %v538, %v665
    %v667 = vadd.f32 %v655, %v666
    %v668 = vadd.f32 %v656, %v666
    %v669 = vadd.f32 %v657, %v666
    %v670 = vadd.f32 %v658, %v666
    %v671 = vadd.f32 %v659, %v666
    %v672 = vadd.f32 %v660, %v666
    %v673 = vadd.f32 %v661, %v666
    %v674 = vadd.f32 %v662, %v666
    %675 = vst [vmem:[#allocation2] sm:$0xff] %v667
    %676 = vst [vmem:[#allocation2 + $0x8] sm:$0xff] %v668
    %677 = vst [vmem:[#allocation2 + $0x10] sm:$0xff] %v669
    %678 = vst [vmem:[#allocation2 + $0x18] sm:$0xff] %v670
    %679 = vst [vmem:[#allocation2 + $0x20] sm:$0xff] %v671
    %680 = vst [vmem:[#allocation2 + $0x28] sm:$0xff] %v672
    %681 = vst [vmem:[#allocation2 + $0x30] sm:$0xff] %v673
    %682 = vst [vmem:[#allocation2 + $0x38] sm:$0xff] %v674
    // Predicated region
    $region14: #{tpu_custom_call.1} parent=1 // pred_check
      _
    $region15: #{tpu_custom_call.1} parent=1 // pred_check_branch
      %684 = sbr.rel (0) target = $region17
    $region16: #{tpu_custom_call.1} parent=1 // pred_region
      %s686 = ssub.s32 1024, 1024
      %687 = vsyncadd [#allocation3], %s686
      %s688 = sshll.u32 [#allocation2], 4
      %s689 = int_to_ptr.vmem [resolvable:$true] %s688
      %694 = dma.vmem_to_hbm [thread:$0]  %s689, 1024, %s3, [#allocation3], 128, 128, 8
    $region17: #{tpu_custom_call.1} parent=1 // pred_fallthru
      _
    // Predicated region
    $region18: #{tpu_custom_call.1} parent=1 // pred_check
      _
    $region19: #{tpu_custom_call.1} parent=1 // pred_check_branch
      %696 = sbr.rel (0) target = $region21
    $region20: #{tpu_custom_call.1} parent=1 // pred_region
      %697 = dma.done [#allocation3], 1024
    $region21: #{tpu_custom_call.1} parent=1 // pred_fallthru
      _
    %698 = vsyncpa [#allocation3], 1

</llo_original>
